<compile_context>
chip_gen: v6e
topology: v6e:2x2x1
jax: 0.10.0
libtpu: 0.0.40
codegen_flags: <defaults>
</compile_context>

<pallas_src>
import math

import jax
import jax.numpy as jnp
from jax import lax
from jax.experimental import pallas as pl
from jax.experimental.pallas import tpu as pltpu


def _pick_tile(dim, cap):
    """Largest tile <= cap that divides dim (falls back to full dim)."""
    if dim <= cap:
        return dim
    t = cap
    while t > 1 and dim % t != 0:
        t //= 2
    return t if dim % t == 0 else dim


# ---------------------------------------------------------------------------
# Kernel 1: fused QKV projection  (T, H) @ (H, 3H) + (1, 3H) -> (T, 3H) bf16
# ---------------------------------------------------------------------------
def qkv_kernel(x_ref, w_ref, b_ref, o_ref, acc_ref):
    @pl.when(pl.program_id(2) == 0)
    def _():
        acc_ref[...] = jnp.zeros_like(acc_ref)

    acc_ref[...] += jnp.dot(x_ref[...], w_ref[...],
                            preferred_element_type=jnp.float32)

    @pl.when(pl.program_id(2) == pl.num_programs(2) - 1)
    def _():
        o_ref[...] = (acc_ref[...] + b_ref[...]).astype(o_ref.dtype)


def qkv_projection(x_bf16, w_qkv, b_qkv, *, tm_cap=512, tn_cap=512, tk_cap=512):
    T, H = x_bf16.shape
    H3 = w_qkv.shape[1]
    tm = _pick_tile(T, tm_cap)
    tn = _pick_tile(H3, tn_cap)
    tk = _pick_tile(H, tk_cap)
    grid = (T // tm, H3 // tn, H // tk)
    return pl.pallas_call(
        qkv_kernel,
        out_shape=jax.ShapeDtypeStruct((T, H3), jnp.bfloat16),
        grid_spec=pltpu.PrefetchScalarGridSpec(
            num_scalar_prefetch=0,
            grid=grid,
            in_specs=[
                pl.BlockSpec((tm, tk), lambda i, j, k: (i, k)),
                pl.BlockSpec((tk, tn), lambda i, j, k: (k, j)),
                pl.BlockSpec((1, tn), lambda i, j, k: (0, j)),
            ],
            out_specs=pl.BlockSpec((tm, tn), lambda i, j, k: (i, j)),
            scratch_shapes=[pltpu.VMEM((tm, tn), jnp.float32)],
        ),
        compiler_params=pltpu.CompilerParams(
            dimension_semantics=("parallel", "parallel", "arbitrary"),
            vmem_limit_bytes=48 * 1024 * 1024,   # headroom below v7x's 64 MiB physical VMEM
        ),
    )(x_bf16, w_qkv, b_qkv)


# ---------------------------------------------------------------------------
# Kernel 2: per-batch attention over ALL heads:  mask, softmax, P @ V
#   Reads Q/K/V slices straight out of the (S, 3H) mixed slab; writes a
#   lane-dense (S, H) context slab already in the final (T, H) layout.
# ---------------------------------------------------------------------------
def make_attn_kernel(num_heads, head_dim, hidden, max_seq):
    def attn_kernel(qkv_ref, m_ref, o_ref):
        S = max_seq
        # Additive mask, broadcast ONCE (outside the head loop — broadcasts are not CSE'd).
        mask = jnp.broadcast_to(m_ref[0, 0], (S, S))            # (S, S) f32
        ctxs = []
        for h in range(num_heads):
            # Static ref-view slices (zero runtime cost), loaded as (S, D) bf16 tiles.
            q = qkv_ref[:, pl.ds(h * head_dim, head_dim)]                  # pre-scaled by 1/sqrt(D)
            k = qkv_ref[:, pl.ds(hidden + h * head_dim, head_dim)]
            v = qkv_ref[:, pl.ds(2 * hidden + h * head_dim, head_dim)]
            # Q @ K^T via dot_general contracting D — no explicit transpose of K materialized.
            s = lax.dot_general(q, k,
                                dimension_numbers=(((1,), (1,)), ((), ())),
                                preferred_element_type=jnp.float32)        # (S, S) f32
            s = s + mask
            s = s - jnp.max(s, axis=-1, keepdims=True)
            p = jnp.exp(s)                                                 # EUP (free slot vs VPU)
            l = jnp.sum(p, axis=-1, keepdims=True)                         # (S, 1)
            ctx = jnp.dot(p.astype(v.dtype), v,
                          preferred_element_type=jnp.float32)              # (S, D) f32
            # Fold 1/sum into the (S, D) context instead of dividing the (S, S) probs;
            # cast to bf16 right away to halve vreg pressure before the concat.
            ctx = (ctx * pl.reciprocal(l, approx=True)).astype(o_ref.dtype)
            ctxs.append(ctx)
        # Single lane-dense (S, H) store — unmasked vst, already in (T, H) layout.
        o_ref[...] = jnp.concatenate(ctxs, axis=-1)
    return attn_kernel


# ---------------------------------------------------------------------------
# One-time parameter prep (done at weight-load time, NOT per forward)
# ---------------------------------------------------------------------------
def prepare_qkv_params(wq, bq, wk, bk, wv, bv, head_dim):
    scale = 1.0 / math.sqrt(head_dim)
    w_qkv = jnp.concatenate([wq * scale, wk, wv], axis=0).T          # (H, 3H)
    b_qkv = jnp.concatenate([bq * scale, bk, bv], axis=0)[None, :]   # (1, 3H)
    return w_qkv.astype(jnp.bfloat16), b_qkv.astype(jnp.float32)


# ---------------------------------------------------------------------------
# Forward wrapper
# ---------------------------------------------------------------------------
def fast_unpad_bert_self_attention(hidden_states, attention_mask, w_qkv, b_qkv,
                                   num_heads, batch, max_seq):
    T, H = hidden_states.shape
    D = H // num_heads
    assert T == batch * max_seq
    H3 = 3 * H

    # Fused QKV projection -> (T, 3H) bf16.
    mixed = qkv_projection(hidden_states.astype(jnp.bfloat16), w_qkv, b_qkv)

    # Attention: one batch element (all heads) per grid step; output already (T, H).
    context = pl.pallas_call(
        make_attn_kernel(num_heads, D, H, max_seq),
        out_shape=jax.ShapeDtypeStruct((T, H), jnp.bfloat16),
        grid=(batch,),
        in_specs=[
            pl.BlockSpec((max_seq, H3), lambda b: (b, 0)),
            pl.BlockSpec((1, 1, 1, max_seq), lambda b: (b, 0, 0, 0)),
        ],
        out_specs=pl.BlockSpec((max_seq, H), lambda b: (b, 0)),
        compiler_params=pltpu.CompilerParams(
            dimension_semantics=("parallel",),
            vmem_limit_bytes=48 * 1024 * 1024,
        ),
    )(mixed, attention_mask.astype(jnp.float32))
    return context


# ---------------------------------------------------------------------------
# Plain-JAX f32 reference for verification
# ---------------------------------------------------------------------------
def reference_attention(hidden_states, attention_mask, wq, bq, wk, bk, wv, bv,
                        num_heads, batch, max_seq):
    T, H = hidden_states.shape
    D = H // num_heads
    q = hidden_states @ wq.T + bq
    k = hidden_states @ wk.T + bk
    v = hidden_states @ wv.T + bv

    def to_heads(x):
        return x.reshape(batch, max_seq, num_heads, D).transpose(0, 2, 1, 3)

    qh, kh, vh = to_heads(q), to_heads(k), to_heads(v)
    s = jnp.einsum("bhqd,bhkd->bhqk", qh, kh) / math.sqrt(D) + attention_mask
    p = jax.nn.softmax(s, axis=-1)
    ctx = jnp.einsum("bhqk,bhkd->bhqd", p, vh)
    return ctx.transpose(0, 2, 1, 3).reshape(T, H)


if __name__ == "__main__":
    # Small shapes consistent with the module: batch=2, max_seq=8, hidden=32, heads=4.
    batch, max_seq, hidden, num_heads = 2, 8, 32, 4
    head_dim = hidden // num_heads
    T = batch * max_seq

    key = jax.random.PRNGKey(0)
    kx, kwq, kwk, kwv, kbq, kbk, kbv = jax.random.split(key, 7)

    hidden_states = jax.random.normal(kx, (T, hidden), dtype=jnp.float32)
    wq = 0.02 * jax.random.normal(kwq, (hidden, hidden), dtype=jnp.float32)
    wk = 0.02 * jax.random.normal(kwk, (hidden, hidden), dtype=jnp.float32)
    wv = 0.02 * jax.random.normal(kwv, (hidden, hidden), dtype=jnp.float32)
    bq = 0.02 * jax.random.normal(kbq, (hidden,), dtype=jnp.float32)
    bk = 0.02 * jax.random.normal(kbk, (hidden,), dtype=jnp.float32)
    bv = 0.02 * jax.random.normal(kbv, (hidden,), dtype=jnp.float32)

    # Variable sequence lengths (unpadded semantics) expressed via additive mask.
    seqlen = jnp.array([8, 6], dtype=jnp.int32)
    key_pos = jnp.arange(max_seq)[None, :]                         # (1, S)
    keep = (key_pos < seqlen[:, None]).astype(jnp.float32)         # (B, S)
    attention_mask = ((1.0 - keep) * -10000.0)[:, None, None, :]   # (B, 1, 1, S)

    # One-time weight prep (fused (H,3H) bf16 weights, 1/sqrt(D) folded into Q).
    w_qkv, b_qkv = prepare_qkv_params(wq, bq, wk, bk, wv, bv, head_dim)

    out = fast_unpad_bert_self_attention(
        hidden_states, attention_mask, w_qkv, b_qkv, num_heads, batch, max_seq,
    )
    out = jax.block_until_ready(out)

    ref = reference_attention(
        hidden_states, attention_mask, wq, bq, wk, bk, wv, bv,
        num_heads, batch, max_seq,
    )
    assert out.shape == (T, hidden)
    err = float(jnp.max(jnp.abs(out.astype(jnp.float32) - ref)))
    # bf16 matmuls + approx reciprocal vs f32 reference -> relaxed tolerance.
    assert jnp.allclose(out.astype(jnp.float32), ref, atol=1e-2, rtol=1e-2), err
    print("KERNEL_OK")
</pallas_src>

<mosaic_0001>
module attributes {stable_mosaic.version = 11 : i64} {
  func.func @qkv_kernel(%arg0: i32, %arg1: i32, %arg2: i32, %arg3: memref<16x32xbf16, #tpu.memory_space<vmem>>, %arg4: memref<32x96xbf16, #tpu.memory_space<vmem>>, %arg5: memref<1x96xf32, #tpu.memory_space<vmem>>, %arg6: memref<16x96xbf16, #tpu.memory_space<vmem>>, %arg7: memref<16x96xf32, #tpu.memory_space<vmem>>) attributes {dimension_semantics = [#tpu.dimension_semantics<parallel>, #tpu.dimension_semantics<parallel>, #tpu.dimension_semantics<arbitrary>], iteration_bounds = array<i64: 1, 1, 1>, scalar_prefetch = 0 : i64, scratch_operands = 1 : i64, tpu.core_type = #tpu.core_type<tc>, window_params = [{transform_indices = @transform_0, window_bounds = array<i64: 16, 32>}, {transform_indices = @transform_1, window_bounds = array<i64: 32, 96>}, {transform_indices = @transform_2, window_bounds = array<i64: 1, 96>}, {transform_indices = @transform_3, window_bounds = array<i64: 16, 96>}]} {
    %c0_i32 = arith.constant 0 : i32
    %0 = arith.cmpi eq, %arg2, %c0_i32 : i32
    %1 = arith.extui %0 : i1 to i32
    %c0_i32_0 = arith.constant 0 : i32
    %2 = arith.cmpi ne, %1, %c0_i32_0 : i32
    scf.if %2 {
      %cst_10 = arith.constant 0.000000e+00 : f32
      %12 = vector.broadcast %cst_10 : f32 to vector<16x96xf32>
      %c0_11 = arith.constant 0 : index
      %c0_12 = arith.constant 0 : index
      %13 = vector.load %arg7[%c0_11, %c0_12] : memref<16x96xf32, #tpu.memory_space<vmem>>, vector<16x96xf32>
      tpu.vector_store %arg7[%c0_11, %c0_12], %12 {strides = array<i32>} : memref<16x96xf32, #tpu.memory_space<vmem>>, vector<16x96xf32>,
    } else {
    }
    %c0 = arith.constant 0 : index
    %c0_1 = arith.constant 0 : index
    %3 = vector.load %arg7[%c0, %c0_1] : memref<16x96xf32, #tpu.memory_space<vmem>>, vector<16x96xf32>
    %c0_2 = arith.constant 0 : index
    %c0_3 = arith.constant 0 : index
    %4 = vector.load %arg3[%c0_2, %c0_3] : memref<16x32xbf16, #tpu.memory_space<vmem>>, vector<16x32xbf16>
    %c0_4 = arith.constant 0 : index
    %c0_5 = arith.constant 0 : index
    %5 = vector.load %arg4[%c0_4, %c0_5] : memref<32x96xbf16, #tpu.memory_space<vmem>>, vector<32x96xbf16>
    %cst = arith.constant dense<0.000000e+00> : vector<16x96xf32>
    %6 = tpu.matmul %4, %5, %cst {dimension_numbers = #tpu.dot_dimension_numbers<[1], [0], [0], [1], [0, 0, 1, 1], [], []>} : vector<16x32xbf16>, vector<32x96xbf16>, vector<16x96xf32> -> vector<16x96xf32>
    %7 = arith.addf %3, %6 : vector<16x96xf32>
    %c0_6 = arith.constant 0 : index
    %c0_7 = arith.constant 0 : index
    %8 = vector.load %arg7[%c0_6, %c0_7] : memref<16x96xf32, #tpu.memory_space<vmem>>, vector<16x96xf32>
    tpu.vector_store %arg7[%c0_6, %c0_7], %7 {strides = array<i32>} : memref<16x96xf32, #tpu.memory_space<vmem>>, vector<16x96xf32>,
    %c0_i32_8 = arith.constant 0 : i32
    %9 = arith.cmpi eq, %arg2, %c0_i32_8 : i32
    %10 = arith.extui %9 : i1 to i32
    %c0_i32_9 = arith.constant 0 : i32
    %11 = arith.cmpi ne, %10, %c0_i32_9 : i32
    scf.if %11 {
      %c0_10 = arith.constant 0 : index
      %c0_11 = arith.constant 0 : index
      %12 = vector.load %arg7[%c0_10, %c0_11] : memref<16x96xf32, #tpu.memory_space<vmem>>, vector<16x96xf32>
      %c0_12 = arith.constant 0 : index
      %c0_13 = arith.constant 0 : index
      %13 = vector.load %arg5[%c0_12, %c0_13] : memref<1x96xf32, #tpu.memory_space<vmem>>, vector<1x96xf32>
      %14 = vector.broadcast %13 : vector<1x96xf32> to vector<16x96xf32>
      %15 = arith.addf %12, %14 : vector<16x96xf32>
      %16 = arith.truncf %15 : vector<16x96xf32> to vector<16x96xbf16>
      %c0_14 = arith.constant 0 : index
      %c0_15 = arith.constant 0 : index
      %17 = vector.load %arg6[%c0_14, %c0_15] : memref<16x96xbf16, #tpu.memory_space<vmem>>, vector<16x96xbf16>
      tpu.vector_store %arg6[%c0_14, %c0_15], %16 {strides = array<i32>} : memref<16x96xbf16, #tpu.memory_space<vmem>>, vector<16x96xbf16>,
    } else {
    }
    return
  }
  func.func @transform_0(%arg0: i32, %arg1: i32, %arg2: i32) -> (i32, i32) {
    %c0_i32 = arith.constant 0 : i32
    return %arg0, %arg2 : i32, i32
  }
  func.func @transform_1(%arg0: i32, %arg1: i32, %arg2: i32) -> (i32, i32) {
    %c0_i32 = arith.constant 0 : i32
    return %arg2, %arg1 : i32, i32
  }
  func.func @transform_2(%arg0: i32, %arg1: i32, %arg2: i32) -> (i32, i32) {
    %c0_i32 = arith.constant 0 : i32
    %c0_i32_0 = arith.constant 0 : i32
    return %c0_i32, %arg1 : i32, i32
  }
  func.func @transform_3(%arg0: i32, %arg1: i32, %arg2: i32) -> (i32, i32) {
    %c0_i32 = arith.constant 0 : i32
    return %arg0, %arg1 : i32, i32
  }
}

</mosaic_0001>

<llo_original>
// kernel: tpu_custom_call.1
$region0: #{tpu_custom_call.1}
  #allocation0 [shape = 'u32[]', space=smem, size = 0x4, offset = 0x4, fixed_abs, tag = 'smem constant byte address 0x4 - core index']
  #allocation1 [shape = 'u32[144,128]{1,0:T(1,128)}', space=vmem, size = 0x12000, scoped, tag = 'internal scratch']
  #allocation2 [shape = 'f32[16,96]{1,0:T(8,128)}', space=vmem, size = 0x2000, scoped, tag = 'scratch operand']
  %s0 = inlined_call_operand.hbm [shape: bf16[16,32], index: 0, kind: input, shape index: {}]
  %s1 = inlined_call_operand.hbm [shape: bf16[32,96], index: 1, kind: input, shape index: {}]
  %s2 = inlined_call_operand.vmem [shape: f32[1,96], index: 2, kind: input, shape index: {}]
  %s3 = inlined_call_operand.hbm [shape: bf16[16,96], index: 3, kind: output, shape index: {}]
  %s4 = sld [smem:[#allocation0]]
  $region38: #{tpu_custom_call.1} parent=0
    _
  %s6 = ssub.s32 1, %s4
  %s7 = scalar_select 0, %s6, %s4
  $region1: #{tpu_custom_call.1} parent=0
    #allocation3 [shape = 'u8[4096]{0}', space=vmem, size = 0x1000, scoped, tag = 'input window, operand 0, single buffered']
    #allocation4 [shape = 's32[1]{0}', space=sflag, size = 0x4, scoped, tag = 'scoped memory for tpu_custom_call.1']
    #allocation5 [shape = 's32[1]{0}', space=sflag, size = 0x4, scoped, tag = 'scoped memory for tpu_custom_call.1']
    #allocation6 [shape = 'u8[8192]{0}', space=vmem, size = 0x2000, scoped, tag = 'input window, operand 1, single buffered']
    #allocation7 [shape = 's32[1]{0}', space=sflag, size = 0x4, scoped, tag = 'scoped memory for tpu_custom_call.1']
    #allocation8 [shape = 'u8[4096]{0}', space=vmem, size = 0x1000, scoped, tag = 'output window, operand 0, single buffered']
    %8 = vsyncpa [#allocation4], 0
    %9 = vsyncpa [#allocation7], 0
    %10 = vsyncpa [#allocation5], 0
    // Predicated region
    $region2: #{tpu_custom_call.1} parent=1 // pred_check
      _
    $region3: #{tpu_custom_call.1} parent=1 // pred_check_branch
      %12 = sbr.rel (0) target = $region5
    $region4: #{tpu_custom_call.1} parent=1 // pred_region
      %s14 = ssub.s32 128, 128
      %15 = vsyncadd [#allocation4], %s14
      %s16 = sshll.u32 [#allocation3], 4
      %s17 = int_to_ptr.vmem [resolvable:$true] %s16
      %22 = dma.hbm_to_vmem [thread:$0]  %s0, 128, %s17, [#allocation4], 64, 64, 4
    $region5: #{tpu_custom_call.1} parent=1 // pred_fallthru
      _
    // Predicated region
    $region6: #{tpu_custom_call.1} parent=1 // pred_check
      _
    $region7: #{tpu_custom_call.1} parent=1 // pred_check_branch
      %24 = sbr.rel (0) target = $region9
    $region8: #{tpu_custom_call.1} parent=1 // pred_region
      %s26 = ssub.s32 256, 256
      %27 = vsyncadd [#allocation7], %s26
      %s28 = sshll.u32 [#allocation6], 4
      %s29 = int_to_ptr.vmem [resolvable:$true] %s28
      %34 = dma.hbm_to_vmem [thread:$0]  %s1, 256, %s29, [#allocation7], 64, 64, 4
    $region9: #{tpu_custom_call.1} parent=1 // pred_fallthru
      _
    // Predicated region
    $region10: #{tpu_custom_call.1} parent=1 // pred_check
      _
    $region11: #{tpu_custom_call.1} parent=1 // pred_check_branch
      %36 = sbr.rel (0) target = $region13
    $region12: #{tpu_custom_call.1} parent=1 // pred_region
      _
    $region13: #{tpu_custom_call.1} parent=1 // pred_fallthru
      _
    // Predicated region
    $region14: #{tpu_custom_call.1} parent=1 // pred_check
      _
    $region15: #{tpu_custom_call.1} parent=1 // pred_check_branch
      %38 = sbr.rel (0) target = $region17
    $region16: #{tpu_custom_call.1} parent=1 // pred_region
      %39 = dma.done [#allocation4], 128
    $region17: #{tpu_custom_call.1} parent=1 // pred_fallthru
      _
    // Predicated region
    $region18: #{tpu_custom_call.1} parent=1 // pred_check
      _
    $region19: #{tpu_custom_call.1} parent=1 // pred_check_branch
      %41 = sbr.rel (0) target = $region21
    $region20: #{tpu_custom_call.1} parent=1 // pred_region
      %42 = dma.done [#allocation7], 256
    $region21: #{tpu_custom_call.1} parent=1 // pred_fallthru
      _
    %p44 = scmp.eq.s32.totalorder 0, 0
    // Predicated region
    $region22: #{tpu_custom_call.1} parent=1 // pred_check
      %p45 = pneg %p44
    $region23: #{tpu_custom_call.1} parent=1 // pred_check_branch
      %47 = sbr.rel (%p45) target = $region25
    $region24: #{tpu_custom_call.1} parent=1 // pred_region
      %vm48 = vcmask 785408
      %49 = vst.msk [vmem:[#allocation2] sm:$0xff] %vm48, 0.0
      %50 = vst.msk [vmem:[#allocation2 + $0x8] sm:$0xff] %vm48, 0.0
    $region25: #{tpu_custom_call.1} parent=1 // pred_fallthru
      _
    %v51 = vld [vmem:[#allocation2] sm:$0xff]
    %v52 = vld [vmem:[#allocation2 + $0x8] sm:$0xff]
    %v53 = vld [vmem:[#allocation3] sm:$0xf]
    %v54 = vld [vmem:[#allocation3 + $0x4] sm:$0xf]
    %v55 = vld [vmem:[#allocation6] sm:$0xf]
    %v56 = vld [vmem:[#allocation6 + $0x4] sm:$0xf]
    %v57 = vld [vmem:[#allocation6 + $0x8] sm:$0xf]
    %v58 = vld [vmem:[#allocation6 + $0xc] sm:$0xf]
    %v61 = vunpack.c.l.b16 %v53
    %v62 = vunpack.c.l.b16 %v54
    %v63 = vpack.c.b16 %v62, %v61
    %v68 = vunpack.c.l.b16 %v55
    %v69 = vunpack.c.l.b16 %v56
    %v70 = vunpack.c.l.b16 %v57
    %v71 = vunpack.c.l.b16 %v58
    %v72 = vpack.c.b16 %v69, %v68
    %v73 = vpack.c.b16 %v71, %v70
    %vm76 = vcmask 261120
    %v78 = vsel %vm76, %v63, 0
    %80 = vmatprep.subr.bf16.mxu0 0
    %81 = vmatpush1.bf16.msra.mxu0 0
    %82 = vmatprep.subr.bf16.mxu0 0
    %83 = vmatpush1.bf16.msra.mxu0 0
    %84 = vmatprep.subr.bf16.mxu0 0
    %85 = vmatpush1.bf16.msra.mxu0 0
    %86 = vmatprep.subr.bf16.mxu0 0
    %87 = vmatpush1.bf16.msra.mxu0 0
    %88 = vmatprep.subr.bf16.mxu0 0
    %89 = vmatpush1.bf16.msra.mxu0 0
    %90 = vmatprep.subr.bf16.mxu0 0
    %91 = vmatpush1.bf16.msra.mxu0 0
    %92 = vmatprep.subr.bf16.mxu0 0
    %93 = vmatpush1.bf16.msra.mxu0 %v73
    %94 = vmatprep.subr.bf16.mxu0 0
    %95 = vmatpush1.bf16.msra.mxu0 %v72
    %96 = vmatprep.subr.bf16.mxu0 0
    %97 = vmatpush2.bf16.msra.mxu0 0
    %98 = vmatprep.subr.bf16.mxu0 0
    %99 = vmatpush2.bf16.msra.mxu0 0
    %100 = vmatprep.subr.bf16.mxu0 0
    %101 = vmatpush2.bf16.msra.mxu0 0
    %102 = vmatprep.subr.bf16.mxu0 0
    %103 = vmatpush2.bf16.msra.mxu0 0
    %104 = vmatprep.subr.bf16.mxu0 0
    %105 = vmatpush2.bf16.msra.mxu0 0
    %106 = vmatprep.subr.bf16.mxu0 0
    %107 = vmatpush2.bf16.msra.mxu0 0
    %108 = vmatprep.subr.bf16.mxu0 0
    %109 = vmatpush2.bf16.msra.mxu0 0
    %110 = vmatprep.subr.bf16.mxu0 0
    %111 = vmatpush2.bf16.msra.mxu0 0
    %112 = vmatprep.mubr.bf16.mxu0 0
    %113 = vmatmul.mubr.bf16.gmra.mxu0 %v78
    %v114 = vpop.f32.mrf.mxu0
    %v115 = vadd.f32 0.0, %v114
    %v116 = vpop.f32.mrf.mxu0
    %v117 = vpop.f32.mrf.mxu0
    %v118 = vadd.f32 0.0, %v117
    %v119 = vpop.f32.mrf.mxu0
    %120 = vdwg.mxu0
    %v121 = vadd.f32 %v51, %v115
    %v122 = vadd.f32 %v52, %v118
    %vm123 = vcmask 785408
    %124 = vst.msk [vmem:[#allocation2] sm:$0xff] %vm123, %v121
    %125 = vst.msk [vmem:[#allocation2 + $0x8] sm:$0xff] %vm123, %v122
    // Predicated region
    $region26: #{tpu_custom_call.1} parent=1 // pred_check
      %p126 = pneg %p44
    $region27: #{tpu_custom_call.1} parent=1 // pred_check_branch
      %128 = sbr.rel (%p126) target = $region29
    $region28: #{tpu_custom_call.1} parent=1 // pred_region
      %v129 = vld [vmem:[#allocation2] sm:$0xff]
      %v130 = vld [vmem:[#allocation2 + $0x8] sm:$0xff]
      %v131 = vld [vmem:[%s2] sm:$0x1]
      %v133 = vlaneseq
      %v134 = vshrl.u32 %v133, 7
      %v135 = vsub.s32 0, %v134
      %v136 = vrot.slane %v131, %v135
      %v138 = vadd.f32 %v129, %v136
      %v139 = vadd.f32 %v130, %v136
      %v140 = vpack.c.bf16 %v139, %v138
      %v142 = vunpack.c.l.b16 %v140
      %v143 = vunpack.c.h.b16 %v140
      %v144 = vpack.c.b16 %v142, %v142
      %v145 = vpack.c.b16 %v143, %v143
      %vm148 = vcmask 781312
      %149 = vst.msk [vmem:[#allocation8] sm:$0xf] %vm148, %v144
      %150 = vst.msk [vmem:[#allocation8 + $0x4] sm:$0xf] %vm148, %v145
    $region29: #{tpu_custom_call.1} parent=1 // pred_fallthru
      _
    // Predicated region
    $region30: #{tpu_custom_call.1} parent=1 // pred_check
      _
    $region31: #{tpu_custom_call.1} parent=1 // pred_check_branch
      %152 = sbr.rel (0) target = $region33
    $region32: #{tpu_custom_call.1} parent=1 // pred_region
      %s154 = ssub.s32 128, 128
      %155 = vsyncadd [#allocation5], %s154
      %s156 = sshll.u32 [#allocation8], 4
      %s157 = int_to_ptr.vmem [resolvable:$true] %s156
      %162 = dma.vmem_to_hbm [thread:$0]  %s157, 128, %s3, [#allocation5], 64, 64, 4
    $region33: #{tpu_custom_call.1} parent=1 // pred_fallthru
      _
    // Predicated region
    $region34: #{tpu_custom_call.1} parent=1 // pred_check
      _
    $region35: #{tpu_custom_call.1} parent=1 // pred_check_branch
      %164 = sbr.rel (0) target = $region37
    $region36: #{tpu_custom_call.1} parent=1 // pred_region
      %165 = dma.done [#allocation5], 128
    $region37: #{tpu_custom_call.1} parent=1 // pred_fallthru
      _
    %166 = vsyncpa [#allocation4], 1
    %167 = vsyncpa [#allocation7], 1
    %168 = vsyncpa [#allocation5], 1

</llo_original>
